<compile_context>
chip_gen: v5e
topology: v5e:2x2
jax: 0.10.0
libtpu: 0.0.40
codegen_flags: <defaults>
</compile_context>

<pallas_src>
import functools

import jax
import jax.numpy as jnp
from jax.experimental import pallas as pl
from jax.experimental.pallas import tpu as pltpu


def _round_up(x, m):
    return ((x + m - 1) // m) * m


def _vmem_budget_bytes():
    """Generation-aware scoped-VMEM request (safe on v5e/v6e/v7x)."""
    try:
        cap = int(getattr(pltpu.get_tpu_info(), "vmem_capacity_bytes"))
    except Exception:
        cap = 64 << 20  # conservative: v7x physical VMEM per TC
    return max(16 << 20, min(cap // 2, 48 << 20))


def _layer_norm_kernel(z_ref, a_ref, b_ref, o_ref, *, eps, inv_h):
    # Tile loaded once, upcast to f32 for the reduction / normalization.
    z = z_ref[...].astype(jnp.float32)                        # (rb, H)
    mu = jnp.sum(z, axis=1, keepdims=True) * inv_h            # per-row mean
    zc = z - mu                                               # reused for var and output
    var = jnp.sum(zc * zc, axis=1, keepdims=True) * inv_h     # population variance
    # eps is added to sigma (std), matching the PyTorch module — do NOT "fix"
    # this to variance+eps.  Exact reciprocal on the tiny (rb, 1) column,
    # broadcast-multiplied across the tile (no full-tile divide).
    inv = 1.0 / (jnp.sqrt(var) + eps)                         # (rb, 1)
    a = a_ref[...].astype(jnp.float32)                        # (1, H)
    b = b_ref[...].astype(jnp.float32)                        # (1, H)
    o_ref[...] = (zc * inv * a + b).astype(o_ref.dtype)


def layer_normalization(z, a2, b2, *, eps=1e-5, row_block=None):
    """Pallas TPU implementation of LayerNormalization.forward.

    z:  (B, H) float array
    a2: (H,) scale parameter
    b2: (H,) shift parameter
    """
    B, H = z.shape
    itemsize = jnp.dtype(z.dtype).itemsize
    # Native sublane tile: 8 rows for 32-bit, 16 for bf16, 32 for int8/fp8 —
    # keeps loads/stores dense for packed dtypes.
    sublane = max(8, 32 // itemsize)

    if row_block is None:
        # ~2 MiB per input tile (HBM roofline saturates around 1–4 MiB tiles;
        # bigger tiles only burn VMEM and compile time).
        target_tile_bytes = 2 << 20
        rb = (target_tile_bytes // max(1, H * itemsize)) // sublane * sublane
        rb = max(sublane, rb)
        # Keep >= ~4 grid steps when the batch allows it: shards the parallel
        # axis across v7x's two TensorCores and hides DMA prologue/epilogue
        # (harmless on single-TC v5e/v6e).
        if B >= 4 * sublane:
            rb = min(rb, max(sublane, _round_up(pl.cdiv(B, 4), sublane)))
    else:
        rb = max(sublane, _round_up(row_block, sublane))
    # Never larger than the (sublane-rounded) batch.
    rb = min(rb, _round_up(B, sublane))

    a_p = a2.reshape(1, H)
    b_p = b2.reshape(1, H)

    kernel = functools.partial(_layer_norm_kernel, eps=float(eps),
                               inv_h=float(1.0 / H))

    # No padding, no output slice: the last block dim is the full H (legal for
    # any H), and the ragged last row-block is masked by Pallas on store.
    return pl.pallas_call(
        kernel,
        out_shape=jax.ShapeDtypeStruct((B, H), z.dtype),
        grid_spec=pltpu.PrefetchScalarGridSpec(
            num_scalar_prefetch=0,
            grid=(pl.cdiv(B, rb),),
            in_specs=[
                pl.BlockSpec((rb, H), lambda i: (i, 0)),
                # Constant block index -> params fetched once and revisited.
                pl.BlockSpec((1, H), lambda i: (0, 0)),
                pl.BlockSpec((1, H), lambda i: (0, 0)),
            ],
            out_specs=pl.BlockSpec((rb, H), lambda i: (i, 0)),
        ),
        compiler_params=pltpu.CompilerParams(
            dimension_semantics=("parallel",),
            vmem_limit_bytes=_vmem_budget_bytes(),
        ),
    )(z, a_p, b_p)


def _reference(z, a2, b2, eps):
    mu = jnp.mean(z, axis=1, keepdims=True)
    sigma = jnp.sqrt(jnp.mean((z - mu) ** 2, axis=1, keepdims=True))
    return (z - mu) / (sigma + eps) * a2 + b2


if __name__ == "__main__":
    # Case 1: the module's typical GRU-cell shape (batch=8, hidden=32).
    key = jax.random.PRNGKey(0)
    batch, hidden = 8, 32
    z = jax.random.normal(key, (batch, hidden), dtype=jnp.float32)
    a2 = jnp.ones((hidden,), dtype=jnp.float32)   # nn.Parameter(torch.ones)
    b2 = jnp.zeros((hidden,), dtype=jnp.float32)  # nn.Parameter(torch.zeros)

    out = jax.block_until_ready(layer_normalization(z, a2, b2, eps=1e-5))
    ref = _reference(z, a2, b2, 1e-5)
    assert out.shape == ref.shape and out.dtype == ref.dtype
    assert jnp.allclose(out, ref, atol=1e-5, rtol=1e-5)

    # Case 2: ragged batch + non-multiple-of-128 hidden, no pads anywhere
    # (Pallas masks the row overhang and the lane tail).
    z2 = jax.random.normal(jax.random.PRNGKey(1), (13, 200), dtype=jnp.float32)
    k_a, k_b = jax.random.split(jax.random.PRNGKey(2))
    a2b = jax.random.normal(k_a, (200,), dtype=jnp.float32)
    b2b = jax.random.normal(k_b, (200,), dtype=jnp.float32)
    out2 = jax.block_until_ready(layer_normalization(z2, a2b, b2b, eps=1e-5))
    ref2 = _reference(z2, a2b, b2b, 1e-5)
    assert jnp.allclose(out2, ref2, atol=1e-5, rtol=1e-5)

    # Case 3: larger batch -> multi-step parallel grid + tile auto-sizing.
    z3 = jax.random.normal(jax.random.PRNGKey(3), (256, 384), dtype=jnp.float32)
    a3 = jax.random.normal(jax.random.PRNGKey(4), (384,), dtype=jnp.float32)
    b3 = jax.random.normal(jax.random.PRNGKey(5), (384,), dtype=jnp.float32)
    out3 = jax.block_until_ready(layer_normalization(z3, a3, b3, eps=1e-5))
    ref3 = _reference(z3, a3, b3, 1e-5)
    assert jnp.allclose(out3, ref3, atol=1e-4, rtol=1e-5)

    print("KERNEL_OK")
</pallas_src>

<mosaic_0001>
module attributes {stable_mosaic.version = 11 : i64} {
  func.func @_layer_norm_kernel(%arg0: i32, %arg1: memref<8x32xf32, #tpu.memory_space<vmem>>, %arg2: memref<1x32xf32, #tpu.memory_space<vmem>>, %arg3: memref<1x32xf32, #tpu.memory_space<vmem>>, %arg4: memref<8x32xf32, #tpu.memory_space<vmem>>) attributes {dimension_semantics = [#tpu.dimension_semantics<parallel>], iteration_bounds = array<i64: 1>, scalar_prefetch = 0 : i64, scratch_operands = 0 : i64, tpu.core_type = #tpu.core_type<tc>, window_params = [{transform_indices = @transform_0, window_bounds = array<i64: 8, 32>}, {pipeline_mode = #tpu.pipeline_mode<synchronous>, transform_indices = @transform_1, window_bounds = array<i64: 1, 32>}, {pipeline_mode = #tpu.pipeline_mode<synchronous>, transform_indices = @transform_2, window_bounds = array<i64: 1, 32>}, {transform_indices = @transform_3, window_bounds = array<i64: 8, 32>}]} {
    %c0 = arith.constant 0 : index
    %c0_0 = arith.constant 0 : index
    %0 = vector.load %arg1[%c0, %c0_0] : memref<8x32xf32, #tpu.memory_space<vmem>>, vector<8x32xf32>
    %cst = arith.constant dense<0.000000e+00> : vector<8xf32>
    %1 = vector.multi_reduction <add>, %0, %cst [1] : vector<8x32xf32> to vector<8xf32>
    %2 = vector.shape_cast %1 : vector<8xf32> to vector<8x1xf32>
    %cst_1 = arith.constant 3.125000e-02 : f32
    %3 = vector.broadcast %cst_1 : f32 to vector<8x1xf32>
    %4 = arith.mulf %2, %3 : vector<8x1xf32>
    %5 = vector.broadcast %4 : vector<8x1xf32> to vector<8x32xf32>
    %6 = arith.subf %0, %5 : vector<8x32xf32>
    %7 = arith.mulf %6, %6 : vector<8x32xf32>
    %cst_2 = arith.constant dense<0.000000e+00> : vector<8xf32>
    %8 = vector.multi_reduction <add>, %7, %cst_2 [1] : vector<8x32xf32> to vector<8xf32>
    %9 = vector.shape_cast %8 : vector<8xf32> to vector<8x1xf32>
    %cst_3 = arith.constant 3.125000e-02 : f32
    %10 = vector.broadcast %cst_3 : f32 to vector<8x1xf32>
    %11 = arith.mulf %9, %10 : vector<8x1xf32>
    %12 = math.sqrt %11 : vector<8x1xf32>
    %cst_4 = arith.constant 9.99999974E-6 : f32
    %13 = vector.broadcast %cst_4 : f32 to vector<8x1xf32>
    %14 = arith.addf %12, %13 : vector<8x1xf32>
    %cst_5 = arith.constant 1.000000e+00 : f32
    %15 = vector.broadcast %cst_5 : f32 to vector<8x1xf32>
    %16 = arith.divf %15, %14 : vector<8x1xf32>
    %c0_6 = arith.constant 0 : index
    %c0_7 = arith.constant 0 : index
    %17 = vector.load %arg2[%c0_6, %c0_7] : memref<1x32xf32, #tpu.memory_space<vmem>>, vector<1x32xf32>
    %c0_8 = arith.constant 0 : index
    %c0_9 = arith.constant 0 : index
    %18 = vector.load %arg3[%c0_8, %c0_9] : memref<1x32xf32, #tpu.memory_space<vmem>>, vector<1x32xf32>
    %19 = vector.broadcast %16 : vector<8x1xf32> to vector<8x32xf32>
    %20 = arith.mulf %6, %19 : vector<8x32xf32>
    %21 = vector.broadcast %17 : vector<1x32xf32> to vector<8x32xf32>
    %22 = arith.mulf %20, %21 : vector<8x32xf32>
    %23 = vector.broadcast %18 : vector<1x32xf32> to vector<8x32xf32>
    %24 = arith.addf %22, %23 : vector<8x32xf32>
    %c0_10 = arith.constant 0 : index
    %c0_11 = arith.constant 0 : index
    %25 = vector.load %arg4[%c0_10, %c0_11] : memref<8x32xf32, #tpu.memory_space<vmem>>, vector<8x32xf32>
    tpu.vector_store %arg4[%c0_10, %c0_11], %24 {strides = array<i32>} : memref<8x32xf32, #tpu.memory_space<vmem>>, vector<8x32xf32>,
    return
  }
  func.func @transform_0(%arg0: i32) -> (i32, i32) {
    %c0_i32 = arith.constant 0 : i32
    %c0_i32_0 = arith.constant 0 : i32
    return %arg0, %c0_i32 : i32, i32
  }
  func.func @transform_1(%arg0: i32) -> (i32, i32) {
    %c0_i32 = arith.constant 0 : i32
    %c0_i32_0 = arith.constant 0 : i32
    %c0_i32_1 = arith.constant 0 : i32
    return %c0_i32, %c0_i32_0 : i32, i32
  }
  func.func @transform_2(%arg0: i32) -> (i32, i32) {
    %c0_i32 = arith.constant 0 : i32
    %c0_i32_0 = arith.constant 0 : i32
    %c0_i32_1 = arith.constant 0 : i32
    return %c0_i32, %c0_i32_0 : i32, i32
  }
  func.func @transform_3(%arg0: i32) -> (i32, i32) {
    %c0_i32 = arith.constant 0 : i32
    %c0_i32_0 = arith.constant 0 : i32
    return %arg0, %c0_i32 : i32, i32
  }
}

</mosaic_0001>

<llo_original>
// kernel: tpu_custom_call.1
$region0: #{tpu_custom_call.1}
  #allocation0 [shape = 'u32[]', space=smem, size = 0x4, offset = 0x4, fixed_abs, tag = 'smem constant byte address 0x4 - core index']
  #allocation1 [shape = 'u32[72,128]{1,0:T(1,128)}', space=vmem, size = 0x9000, scoped, tag = 'internal scratch']
  %s0 = inlined_call_operand.hbm [shape: f32[8,32], index: 0, kind: input, shape index: {}]
  %s1 = inlined_call_operand.hbm [shape: f32[1,32], index: 1, kind: input, shape index: {}]
  %s2 = inlined_call_operand.vmem [shape: f32[1,32], index: 2, kind: input, shape index: {}]
  %s3 = inlined_call_operand.hbm [shape: f32[8,32], index: 3, kind: output, shape index: {}]
  %s4 = sld [smem:[#allocation0]]
  $region30: #{tpu_custom_call.1} parent=0
    _
  %s6 = ssub.s32 1, %s4
  %s7 = scalar_select 0, %s6, %s4
  $region1: #{tpu_custom_call.1} parent=0
    #allocation2 [shape = 'u8[4096]{0}', space=vmem, size = 0x1000, scoped, tag = 'input window, operand 0, single buffered']
    #allocation3 [shape = 's32[1]{0}', space=sflag, size = 0x4, scoped, tag = 'scoped memory for tpu_custom_call.1']
    #allocation4 [shape = 's32[1]{0}', space=sflag, size = 0x4, scoped, tag = 'scoped memory for tpu_custom_call.1']
    #allocation5 [shape = 'u8[512]{0}', space=vmem, size = 0x400, scoped, tag = 'input window, operand 1, single buffered']
    #allocation6 [shape = 's32[1]{0}', space=sflag, size = 0x4, scoped, tag = 'scoped memory for tpu_custom_call.1']
    #allocation7 [shape = 'u8[4096]{0}', space=vmem, size = 0x1000, scoped, tag = 'output window, operand 0, single buffered']
    %8 = vsyncpa [#allocation3], 0
    %9 = vsyncpa [#allocation6], 0
    %10 = vsyncpa [#allocation4], 0
    // Predicated region
    $region2: #{tpu_custom_call.1} parent=1 // pred_check
      _
    $region3: #{tpu_custom_call.1} parent=1 // pred_check_branch
      %12 = sbr.rel (0) target = $region5
    $region4: #{tpu_custom_call.1} parent=1 // pred_region
      %14 = vsyncadd [#allocation3], 0
      %s16 = sshll.u32 %s0, 4
      %s17 = int_to_ptr.hbm [resolvable:$true] %s16
      %s18 = sshll.u32 [#allocation2], 4
      %s19 = int_to_ptr.vmem [resolvable:$true] %s18
      %21 = dma.hbm_to_vmem [thread:$0]  %s17, 128, %s19, [#allocation3]
    $region5: #{tpu_custom_call.1} parent=1 // pred_fallthru
      _
    // Predicated region
    $region6: #{tpu_custom_call.1} parent=1 // pred_check
      _
    $region7: #{tpu_custom_call.1} parent=1 // pred_check_branch
      %23 = sbr.rel (0) target = $region9
    $region8: #{tpu_custom_call.1} parent=1 // pred_region
      %25 = vsyncadd [#allocation6], 0
      %s27 = sshll.u32 %s1, 4
      %s28 = int_to_ptr.hbm [resolvable:$true] %s27
      %s29 = sshll.u32 [#allocation5], 4
      %s30 = int_to_ptr.vmem [resolvable:$true] %s29
      %32 = dma.hbm_to_vmem [thread:$0]  %s28, 16, %s30, [#allocation6]
    $region9: #{tpu_custom_call.1} parent=1 // pred_fallthru
      _
    // Predicated region
    $region10: #{tpu_custom_call.1} parent=1 // pred_check
      _
    $region11: #{tpu_custom_call.1} parent=1 // pred_check_branch
      %34 = sbr.rel (0) target = $region13
    $region12: #{tpu_custom_call.1} parent=1 // pred_region
      _
    $region13: #{tpu_custom_call.1} parent=1 // pred_fallthru
      _
    // Predicated region
    $region14: #{tpu_custom_call.1} parent=1 // pred_check
      _
    $region15: #{tpu_custom_call.1} parent=1 // pred_check_branch
      %36 = sbr.rel (0) target = $region17
    $region16: #{tpu_custom_call.1} parent=1 // pred_region
      %38 = dma.done [#allocation3], 128
    $region17: #{tpu_custom_call.1} parent=1 // pred_fallthru
      _
    // Predicated region
    $region18: #{tpu_custom_call.1} parent=1 // pred_check
      _
    $region19: #{tpu_custom_call.1} parent=1 // pred_check_branch
      %40 = sbr.rel (0) target = $region21
    $region20: #{tpu_custom_call.1} parent=1 // pred_region
      %42 = dma.done [#allocation6], 16
    $region21: #{tpu_custom_call.1} parent=1 // pred_fallthru
      _
    %v43 = vld [vmem:[#allocation2] sm:$0xff]
    %vm44 = vcmask 261120
    %v45 = vsel %vm44, %v43, 0.0
    %46 = vadd.xlane.f32.xlu0 %v45
    %v47 = vpop.xlane.xlu0 %46
    %v48 = vmul.f32 %v47, 0.03125
    %v49 = vsub.f32 %v43, %v48
    %v50 = vmul.f32 %v49, %v49
    %v51 = vsel %vm44, %v50, 0.0
    %52 = vadd.xlane.f32.xlu0 %v51
    %v53 = vpop.xlane.xlu0 %52
    %v54 = vmul.f32 %v53, 0.03125
    %v55 = vrsqrt.pop %v54
    %v56 = vmul.f32 %v55, %v54
    %v57 = vmul.f32 %v56, %v55
    %v58 = vmul.f32 0.5, %v57
    %v59 = vsub.f32 1.5, %v58
    %v60 = vmul.f32 %v55, %v59
    %v61 = vmul.f32 %v54, %v60
    %vm62 = vcmp.eq.f32.partialorder %v54, inf
    %v63 = vsel %vm62, %v54, %v61
    %vm64 = vcmp.eq.f32.partialorder %v54, 0.0
    %v65 = vand.u32 %v54, 2147483648
    %v66 = vsel %vm64, %v65, %v63
    %v67 = vadd.f32 %v66, 1e-05
    %v68 = vrcp.pop %v67
    %v69 = vmul.f32 %v67, %v68
    %v70 = vsub.f32 1.0, %v69
    %v71 = vmul.f32 %v68, %v70
    %v72 = vadd.f32 %v68, %v71
    %vm73 = vweird.f32 %v67
    %vm74 = vweird.f32 %v68
    %vm75 = vmor %vm73, %vm74
    %v76 = vsel %vm75, %v68, %v72
    %v77 = vand.u32 2147483647, %v67
    %vm78 = vcmp.eq.f32.partialorder %v77, 8.507059e+37
    %v79 = vand.u32 %v67, 2147483648
    %v80 = vor.u32 1.1754944e-38, %v79
    %v81 = vsel %vm78, %v80, %v76
    %v82 = vmul.f32 1.0, %v81
    %v83 = vld [vmem:[#allocation5] sm:$0x1]
    %v84 = vld [vmem:[%s2] sm:$0x1]
    %v85 = vmul.f32 %v49, %v82
    %v87 = vperm.slane %v83, 0
    %v89 = vmul.f32 %v85, %v87
    %v91 = vperm.slane %v84, 0
    %v93 = vadd.f32 %v89, %v91
    %94 = vst.msk [vmem:[#allocation7] sm:$0xff] %vm44, %v93
    // Predicated region
    $region22: #{tpu_custom_call.1} parent=1 // pred_check
      _
    $region23: #{tpu_custom_call.1} parent=1 // pred_check_branch
      %96 = sbr.rel (0) target = $region25
    $region24: #{tpu_custom_call.1} parent=1 // pred_region
      %98 = vsyncadd [#allocation4], 0
      %s100 = sshll.u32 [#allocation7], 4
      %s101 = int_to_ptr.vmem [resolvable:$true] %s100
      %s102 = sshll.u32 %s3, 4
      %s103 = int_to_ptr.hbm [resolvable:$true] %s102
      %105 = dma.vmem_to_hbm [thread:$0]  %s101, 128, %s103, [#allocation4]
    $region25: #{tpu_custom_call.1} parent=1 // pred_fallthru
      _
    // Predicated region
    $region26: #{tpu_custom_call.1} parent=1 // pred_check
      _
    $region27: #{tpu_custom_call.1} parent=1 // pred_check_branch
      %107 = sbr.rel (0) target = $region29
    $region28: #{tpu_custom_call.1} parent=1 // pred_region
      %109 = dma.done [#allocation4], 128
    $region29: #{tpu_custom_call.1} parent=1 // pred_fallthru
      _
    %110 = vsyncpa [#allocation3], 1
    %111 = vsyncpa [#allocation6], 1
    %112 = vsyncpa [#allocation4], 1

</llo_original>
